<compile_context>
chip_gen: v7x
topology: tpu7x:2x2x1
jax: 0.10.0
libtpu: 0.0.40
codegen_flags: <defaults>
</compile_context>

<pallas_src>
import functools

import jax
import jax.numpy as jnp
from jax.experimental import pallas as pl
from jax.experimental.pallas import tpu as pltpu


def _model_kernel(x_ref, p_ref, o_ref):
    batch = x_ref.shape[0]
    d = x_ref.shape[1]

    x = x_ref[...]
    # Static slices of the packed parameter block (free — no runtime cost).
    w1 = p_ref[0:d, :]
    w2 = p_ref[d:2 * d, :]
    w3 = p_ref[2 * d:3 * d, :]
    b1 = p_ref[3 * d + 0:3 * d + 1, :]
    b2 = p_ref[3 * d + 1:3 * d + 2, :]
    b3 = p_ref[3 * d + 2:3 * d + 3, :]

    # linear1
    a1 = jnp.dot(x, w1, preferred_element_type=jnp.float32) + b1
    # DanglingAttention's own Linear
    a2 = jnp.dot(a1, w2, preferred_element_type=jnp.float32) + b2

    # Fold DanglingBias linear + double bias-add + full sum:
    #   sum_{i,j}((a2 @ w3)[i,j] + 2*b3[j]) = sum_j( (sum_i a2[i,:]) @ w3 + 2*B*b3 )[j]
    s = jnp.sum(a2, axis=0, keepdims=True)                         # (1, D) sublane reduce
    row = jnp.dot(s, w3, preferred_element_type=jnp.float32)       # (1, D) tiny MXU dot
    row = row + (2.0 * batch) * b3                                 # (1, D) VPU add
    o_ref[...] = jnp.sum(row, axis=1, keepdims=True)               # (1, 1)


def pack_params(w1, b1, w2, b2, w3, b3):
    """Pack all parameters once (at init time) into a single (3D+3, D) operand.

    w*: (D, D) f32, already transposed vs PyTorch ((in, out) layout).
    b*: (1, D) f32.
    """
    return jnp.concatenate([w1, w2, w3, b1, b2, b3], axis=0)


@jax.jit
def model_container_forward(x, params):
    """x: (B, D) f32; params: (3D+3, D) packed via pack_params.
    Returns scalar f32 = ((((x@w1+b1)@w2+b2)@w3+b3) + b3).sum()."""
    vmem_spec = pl.BlockSpec(memory_space=pltpu.MemorySpace.VMEM)
    out = pl.pallas_call(
        _model_kernel,
        out_shape=jax.ShapeDtypeStruct((1, 1), jnp.float32),
        in_specs=[vmem_spec, vmem_spec],
        out_specs=vmem_spec,
    )(x, params)
    return out[0, 0]


def _init_linear_params(key, dim):
    # Deterministic init mimicking torch.nn.Linear default: U(-1/sqrt(in), 1/sqrt(in))
    kw, kb = jax.random.split(key)
    bound = 1.0 / jnp.sqrt(jnp.float32(dim))
    # weight stored as (in, out) == PyTorch (out, in) transposed
    w = jax.random.uniform(kw, (dim, dim), jnp.float32, -bound, bound)
    b = jax.random.uniform(kb, (1, dim), jnp.float32, -bound, bound)
    return w, b


if __name__ == "__main__":
    dim = 16
    batch = 8

    root = jax.random.PRNGKey(0)
    k_x, k1, k2, k3 = jax.random.split(root, 4)

    x = jax.random.normal(k_x, (batch, dim), jnp.float32)
    w1, b1 = _init_linear_params(k1, dim)   # linear1
    w2, b2 = _init_linear_params(k2, dim)   # DanglingAttention's own Linear
    w3, b3 = _init_linear_params(k3, dim)   # DanglingBias (d_linear)

    # Pack parameters ONCE (outside the per-forward hot path).
    params = pack_params(w1, b1, w2, b2, w3, b3)
    params = jax.block_until_ready(params)

    result = model_container_forward(x, params)
    result = jax.block_until_ready(result)

    # Pure-JAX reference check (same math, no Pallas, no algebraic folding)
    ref_a1 = x @ w1 + b1
    ref_a2 = ref_a1 @ w2 + b2
    ref_a3 = ref_a2 @ w3 + b3
    ref = jnp.sum(ref_a3 + b3)
    assert jnp.allclose(result, ref, rtol=1e-5, atol=1e-4), (result, ref)

    print("KERNEL_OK")
</pallas_src>

<mosaic_0001>
module attributes {stable_mosaic.version = 11 : i64} {
  func.func @_model_kernel(%arg0: memref<8x16xf32, #tpu.memory_space<vmem>>, %arg1: memref<51x16xf32, #tpu.memory_space<vmem>>, %arg2: memref<1x1xf32, #tpu.memory_space<vmem>>) attributes {dimension_semantics = [], scalar_prefetch = 0 : i64, scratch_operands = 0 : i64, tpu.core_type = #tpu.core_type<tc>} {
    %c0 = arith.constant 0 : index
    %c0_0 = arith.constant 0 : index
    %0 = vector.load %arg0[%c0, %c0_0] : memref<8x16xf32, #tpu.memory_space<vmem>>, vector<8x16xf32>
    %c0_1 = arith.constant 0 : index
    %c0_2 = arith.constant 0 : index
    %1 = vector.load %arg1[%c0_1, %c0_2] : memref<51x16xf32, #tpu.memory_space<vmem>>, vector<16x16xf32>
    %c16 = arith.constant 16 : index
    %c0_3 = arith.constant 0 : index
    %2 = vector.load %arg1[%c16, %c0_3] : memref<51x16xf32, #tpu.memory_space<vmem>>, vector<16x16xf32>
    %c32 = arith.constant 32 : index
    %c0_4 = arith.constant 0 : index
    %3 = vector.load %arg1[%c32, %c0_4] : memref<51x16xf32, #tpu.memory_space<vmem>>, vector<16x16xf32>
    %c48 = arith.constant 48 : index
    %c0_5 = arith.constant 0 : index
    %4 = vector.load %arg1[%c48, %c0_5] : memref<51x16xf32, #tpu.memory_space<vmem>>, vector<1x16xf32>
    %c49 = arith.constant 49 : index
    %c0_6 = arith.constant 0 : index
    %5 = vector.load %arg1[%c49, %c0_6] : memref<51x16xf32, #tpu.memory_space<vmem>>, vector<1x16xf32>
    %c50 = arith.constant 50 : index
    %c0_7 = arith.constant 0 : index
    %6 = vector.load %arg1[%c50, %c0_7] : memref<51x16xf32, #tpu.memory_space<vmem>>, vector<1x16xf32>
    %cst = arith.constant dense<0.000000e+00> : vector<8x16xf32>
    %7 = tpu.matmul %0, %1, %cst {dimension_numbers = #tpu.dot_dimension_numbers<[1], [0], [0], [1], [0, 0, 1, 1], [], []>} : vector<8x16xf32>, vector<16x16xf32>, vector<8x16xf32> -> vector<8x16xf32>
    %8 = vector.broadcast %4 : vector<1x16xf32> to vector<8x16xf32>
    %9 = arith.addf %7, %8 : vector<8x16xf32>
    %cst_8 = arith.constant dense<0.000000e+00> : vector<8x16xf32>
    %10 = tpu.matmul %9, %2, %cst_8 {dimension_numbers = #tpu.dot_dimension_numbers<[1], [0], [0], [1], [0, 0, 1, 1], [], []>} : vector<8x16xf32>, vector<16x16xf32>, vector<8x16xf32> -> vector<8x16xf32>
    %11 = vector.broadcast %5 : vector<1x16xf32> to vector<8x16xf32>
    %12 = arith.addf %10, %11 : vector<8x16xf32>
    %cst_9 = arith.constant dense<0.000000e+00> : vector<16xf32>
    %13 = vector.multi_reduction <add>, %12, %cst_9 [0] : vector<8x16xf32> to vector<16xf32>
    %14 = vector.shape_cast %13 : vector<16xf32> to vector<1x16xf32>
    %cst_10 = arith.constant dense<0.000000e+00> : vector<1x16xf32>
    %15 = tpu.matmul %14, %3, %cst_10 {dimension_numbers = #tpu.dot_dimension_numbers<[1], [0], [0], [1], [0, 0, 1, 1], [], []>} : vector<1x16xf32>, vector<16x16xf32>, vector<1x16xf32> -> vector<1x16xf32>
    %cst_11 = arith.constant 1.600000e+01 : f32
    %16 = vector.broadcast %cst_11 : f32 to vector<1x16xf32>
    %17 = arith.mulf %16, %6 : vector<1x16xf32>
    %18 = arith.addf %15, %17 : vector<1x16xf32>
    %cst_12 = arith.constant dense<0.000000e+00> : vector<1xf32>
    %19 = vector.multi_reduction <add>, %18, %cst_12 [1] : vector<1x16xf32> to vector<1xf32>
    %20 = vector.shape_cast %19 : vector<1xf32> to vector<1x1xf32>
    %c0_13 = arith.constant 0 : index
    %c0_14 = arith.constant 0 : index
    %21 = vector.load %arg2[%c0_13, %c0_14] : memref<1x1xf32, #tpu.memory_space<vmem>>, vector<1x1xf32>
    tpu.vector_store %arg2[%c0_13, %c0_14], %20 {strides = array<i32>} : memref<1x1xf32, #tpu.memory_space<vmem>>, vector<1x1xf32>,
    return
  }
}

</mosaic_0001>

<llo_original>
// kernel: model_container_forward.1
$region0: #{model_container_forward.1}
  #allocation0 [shape = 'u32[]', space=smem, size = 0x4, offset = 0x4, fixed_abs, tag = 'smem constant byte address 0x4 - core index']
  #allocation1 [shape = 'u32[144,128]{1,0:T(1,128)}', space=vmem, size = 0x12000, scoped, tag = 'internal scratch']
  %s0 = inlined_call_operand.vmem [shape: f32[8,16], index: 0, kind: input, shape index: {}]
  %s1 = inlined_call_operand.vmem [shape: f32[51,16], index: 1, kind: input, shape index: {}]
  %s2 = inlined_call_operand.hbm [shape: f32[1,1], index: 2, kind: output, shape index: {}]
  %s3 = sld [smem:[#allocation0]]
  $region18: #{model_container_forward.1} parent=0
    _
  %s5 = ssub.s32 1, %s3
  %s6 = scalar_select 0, %s5, %s3
  $region1: #{model_container_forward.1} parent=0
    #allocation2 [shape = 'u8[512]{0}', space=vmem, size = 0x400, scoped, tag = 'output window, operand 0, single buffered']
    #allocation3 [shape = 's32[1]{0}', space=sflag, size = 0x4, scoped, tag = 'scoped memory for model_container_forward.1']
    %7 = vsyncpa [#allocation3], 0
    // Predicated region
    $region2: #{model_container_forward.1} parent=1 // pred_check
      _
    $region3: #{model_container_forward.1} parent=1 // pred_check_branch
      %9 = sbr.rel (0) target = $region5
    $region4: #{model_container_forward.1} parent=1 // pred_region
      _
    $region5: #{model_container_forward.1} parent=1 // pred_fallthru
      _
    // Predicated region
    $region6: #{model_container_forward.1} parent=1 // pred_check
      _
    $region7: #{model_container_forward.1} parent=1 // pred_check_branch
      %11 = sbr.rel (0) target = $region9
    $region8: #{model_container_forward.1} parent=1 // pred_region
      _
    $region9: #{model_container_forward.1} parent=1 // pred_fallthru
      _
    %v12 = vld [vmem:[%s0] sm:$0xff]
    %v13 = vld [vmem:[%s1] sm:$0xff]
    %v14 = vld [vmem:[%s1 + $0x8] sm:$0xff]
    %v15 = vld [vmem:[%s1 + $0x10] sm:$0xff]
    %v16 = vld [vmem:[%s1 + $0x18] sm:$0xff]
    %v17 = vld [vmem:[%s1 + $0x20] sm:$0xff]
    %v18 = vld [vmem:[%s1 + $0x28] sm:$0xff]
    %v19 = vld [vmem:[%s1 + $0x30] sm:$0x1]
    %v20 = vld [vmem:[%s1 + $0x31] sm:$0x1]
    %v21 = vld [vmem:[%s1 + $0x32] sm:$0x1]
    %v22 = vlaneseq
    %v23 = vshrl.u32 %v22, 7
    %v24 = vsub.s32 0, %v23
    %v25 = vrot.slane %v19, %v24
    %vm26 = vcmask 130048
    %v28 = vsel %vm26, %v12, 0
    %30 = vmatprep.subr.mxu0 0.0
    %31 = vmatpush1.msra.mxu0 %v13
    %32 = vmatprep.subr.mxu0 0.0
    %33 = vmatpush1.msra.mxu0 %v14
    %34 = vmatprep.subr.mxu0 0.0
    %35 = vmatpush1.msra.mxu0 0.0
    %36 = vmatprep.subr.mxu0 0.0
    %37 = vmatpush1.msra.mxu0 0.0
    %38 = vmatprep.subr.mxu0 0.0
    %39 = vmatpush1.msra.mxu0 0.0
    %40 = vmatprep.subr.mxu0 0.0
    %41 = vmatpush1.msra.mxu0 0.0
    %42 = vmatprep.subr.mxu0 0.0
    %43 = vmatpush1.msra.mxu0 0.0
    %44 = vmatprep.subr.mxu0 0.0
    %45 = vmatpush1.msra.mxu0 0.0
    %46 = vmatprep.subr.mxu0 0.0
    %47 = vmatpush1.msra.mxu0 0.0
    %48 = vmatprep.subr.mxu0 0.0
    %49 = vmatpush1.msra.mxu0 0.0
    %50 = vmatprep.subr.mxu0 0.0
    %51 = vmatpush1.msra.mxu0 0.0
    %52 = vmatprep.subr.mxu0 0.0
    %53 = vmatpush1.msra.mxu0 0.0
    %54 = vmatprep.subr.mxu0 0.0
    %55 = vmatpush1.msra.mxu0 0.0
    %56 = vmatprep.subr.mxu0 0.0
    %57 = vmatpush1.msra.mxu0 0.0
    %58 = vmatprep.subr.mxu0 0.0
    %59 = vmatpush1.msra.mxu0 0.0
    %60 = vmatprep.subr.mxu0 0.0
    %61 = vmatpush1.msra.mxu0 0.0
    %62 = vmatprep.subr.mxu0 0.0
    %63 = vmatpush1.msra.mxu0 0.0
    %64 = vmatprep.subr.mxu0 0.0
    %65 = vmatpush1.msra.mxu0 0.0
    %66 = vmatprep.subr.mxu0 0.0
    %67 = vmatpush1.msra.mxu0 0.0
    %68 = vmatprep.subr.mxu0 0.0
    %69 = vmatpush1.msra.mxu0 0.0
    %70 = vmatprep.subr.mxu0 0.0
    %71 = vmatpush1.msra.mxu0 0.0
    %72 = vmatprep.subr.mxu0 0.0
    %73 = vmatpush1.msra.mxu0 0.0
    %74 = vmatprep.subr.mxu0 0.0
    %75 = vmatpush1.msra.mxu0 0.0
    %76 = vmatprep.subr.mxu0 0.0
    %77 = vmatpush1.msra.mxu0 0.0
    %78 = vmatprep.subr.mxu0 0.0
    %79 = vmatpush1.msra.mxu0 0.0
    %80 = vmatprep.subr.mxu0 0.0
    %81 = vmatpush1.msra.mxu0 0.0
    %82 = vmatprep.subr.mxu0 0.0
    %83 = vmatpush1.msra.mxu0 0.0
    %84 = vmatprep.subr.mxu0 0.0
    %85 = vmatpush1.msra.mxu0 0.0
    %86 = vmatprep.subr.mxu0 0.0
    %87 = vmatpush1.msra.mxu0 0.0
    %88 = vmatprep.subr.mxu0 0.0
    %89 = vmatpush1.msra.mxu0 0.0
    %90 = vmatprep.subr.mxu0 0.0
    %91 = vmatpush1.msra.mxu0 0.0
    %92 = vmatprep.subr.mxu0 0.0
    %93 = vmatpush1.msra.mxu0 0.0
    %94 = vmatprep.mubr.f32.mxu0 0.0
    %95 = vmatmul.mubr.f32.gmra.mrb[0].mxu0 %v28
    %v96 = vpop.f32.mrb[0].mxu0
    %v97 = vadd.f32 %v25, %v96
    %v98 = vpop.f32.mrb[0].mxu0
    %99 = vdwg.mxu0
    %v100 = vlaneseq
    %v101 = vshrl.u32 %v100, 7
    %v102 = vsub.s32 0, %v101
    %v103 = vrot.slane %v20, %v102
    %v105 = vsel %vm26, %v97, 0
    %107 = vmatprep.subr.mxu0 0.0
    %108 = vmatpush1.msra.mxu0 %v15
    %109 = vmatprep.subr.mxu0 0.0
    %110 = vmatpush1.msra.mxu0 %v16
    %111 = vmatprep.subr.mxu0 0.0
    %112 = vmatpush1.msra.mxu0 0.0
    %113 = vmatprep.subr.mxu0 0.0
    %114 = vmatpush1.msra.mxu0 0.0
    %115 = vmatprep.subr.mxu0 0.0
    %116 = vmatpush1.msra.mxu0 0.0
    %117 = vmatprep.subr.mxu0 0.0
    %118 = vmatpush1.msra.mxu0 0.0
    %119 = vmatprep.subr.mxu0 0.0
    %120 = vmatpush1.msra.mxu0 0.0
    %121 = vmatprep.subr.mxu0 0.0
    %122 = vmatpush1.msra.mxu0 0.0
    %123 = vmatprep.subr.mxu0 0.0
    %124 = vmatpush1.msra.mxu0 0.0
    %125 = vmatprep.subr.mxu0 0.0
    %126 = vmatpush1.msra.mxu0 0.0
    %127 = vmatprep.subr.mxu0 0.0
    %128 = vmatpush1.msra.mxu0 0.0
    %129 = vmatprep.subr.mxu0 0.0
    %130 = vmatpush1.msra.mxu0 0.0
    %131 = vmatprep.subr.mxu0 0.0
    %132 = vmatpush1.msra.mxu0 0.0
    %133 = vmatprep.subr.mxu0 0.0
    %134 = vmatpush1.msra.mxu0 0.0
    %135 = vmatprep.subr.mxu0 0.0
    %136 = vmatpush1.msra.mxu0 0.0
    %137 = vmatprep.subr.mxu0 0.0
    %138 = vmatpush1.msra.mxu0 0.0
    %139 = vmatprep.subr.mxu0 0.0
    %140 = vmatpush1.msra.mxu0 0.0
    %141 = vmatprep.subr.mxu0 0.0
    %142 = vmatpush1.msra.mxu0 0.0
    %143 = vmatprep.subr.mxu0 0.0
    %144 = vmatpush1.msra.mxu0 0.0
    %145 = vmatprep.subr.mxu0 0.0
    %146 = vmatpush1.msra.mxu0 0.0
    %147 = vmatprep.subr.mxu0 0.0
    %148 = vmatpush1.msra.mxu0 0.0
    %149 = vmatprep.subr.mxu0 0.0
    %150 = vmatpush1.msra.mxu0 0.0
    %151 = vmatprep.subr.mxu0 0.0
    %152 = vmatpush1.msra.mxu0 0.0
    %153 = vmatprep.subr.mxu0 0.0
    %154 = vmatpush1.msra.mxu0 0.0
    %155 = vmatprep.subr.mxu0 0.0
    %156 = vmatpush1.msra.mxu0 0.0
    %157 = vmatprep.subr.mxu0 0.0
    %158 = vmatpush1.msra.mxu0 0.0
    %159 = vmatprep.subr.mxu0 0.0
    %160 = vmatpush1.msra.mxu0 0.0
    %161 = vmatprep.subr.mxu0 0.0
    %162 = vmatpush1.msra.mxu0 0.0
    %163 = vmatprep.subr.mxu0 0.0
    %164 = vmatpush1.msra.mxu0 0.0
    %165 = vmatprep.subr.mxu0 0.0
    %166 = vmatpush1.msra.mxu0 0.0
    %167 = vmatprep.subr.mxu0 0.0
    %168 = vmatpush1.msra.mxu0 0.0
    %169 = vmatprep.subr.mxu0 0.0
    %170 = vmatpush1.msra.mxu0 0.0
    %171 = vmatprep.mubr.f32.mxu0 0.0
    %172 = vmatmul.mubr.f32.gmra.mrb[0].mxu0 %v105
    %v173 = vpop.f32.mrb[0].mxu0
    %v174 = vadd.f32 %v103, %v173
    %v175 = vpop.f32.mrb[0].mxu0
    %176 = vdwg.mxu0
    %v177 = vsel %vm26, %v174, 0.0
    %v178 = vrot.slane %v177, 4
    %v179 = vadd.f32 %v177, %v178
    %v180 = vrot.slane %v179, 2
    %v181 = vadd.f32 %v179, %v180
    %v182 = vrot.slane %v181, 1
    %v183 = vadd.f32 %v181, %v182
    %v184 = vmul.f32 %v21, 16.0
    %v186 = vsel %vm26, %v183, 0
    %188 = vmatprep.subr.mxu0 0.0
    %189 = vmatpush1.msra.mxu0 %v17
    %190 = vmatprep.subr.mxu0 0.0
    %191 = vmatpush1.msra.mxu0 %v18
    %192 = vmatprep.subr.mxu0 0.0
    %193 = vmatpush1.msra.mxu0 0.0
    %194 = vmatprep.subr.mxu0 0.0
    %195 = vmatpush1.msra.mxu0 0.0
    %196 = vmatprep.subr.mxu0 0.0
    %197 = vmatpush1.msra.mxu0 0.0
    %198 = vmatprep.subr.mxu0 0.0
    %199 = vmatpush1.msra.mxu0 0.0
    %200 = vmatprep.subr.mxu0 0.0
    %201 = vmatpush1.msra.mxu0 0.0
    %202 = vmatprep.subr.mxu0 0.0
    %203 = vmatpush1.msra.mxu0 0.0
    %204 = vmatprep.subr.mxu0 0.0
    %205 = vmatpush1.msra.mxu0 0.0
    %206 = vmatprep.subr.mxu0 0.0
    %207 = vmatpush1.msra.mxu0 0.0
    %208 = vmatprep.subr.mxu0 0.0
    %209 = vmatpush1.msra.mxu0 0.0
    %210 = vmatprep.subr.mxu0 0.0
    %211 = vmatpush1.msra.mxu0 0.0
    %212 = vmatprep.subr.mxu0 0.0
    %213 = vmatpush1.msra.mxu0 0.0
    %214 = vmatprep.subr.mxu0 0.0
    %215 = vmatpush1.msra.mxu0 0.0
    %216 = vmatprep.subr.mxu0 0.0
    %217 = vmatpush1.msra.mxu0 0.0
    %218 = vmatprep.subr.mxu0 0.0
    %219 = vmatpush1.msra.mxu0 0.0
    %220 = vmatprep.subr.mxu0 0.0
    %221 = vmatpush1.msra.mxu0 0.0
    %222 = vmatprep.subr.mxu0 0.0
    %223 = vmatpush1.msra.mxu0 0.0
    %224 = vmatprep.subr.mxu0 0.0
    %225 = vmatpush1.msra.mxu0 0.0
    %226 = vmatprep.subr.mxu0 0.0
    %227 = vmatpush1.msra.mxu0 0.0
    %228 = vmatprep.subr.mxu0 0.0
    %229 = vmatpush1.msra.mxu0 0.0
    %230 = vmatprep.subr.mxu0 0.0
    %231 = vmatpush1.msra.mxu0 0.0
    %232 = vmatprep.subr.mxu0 0.0
    %233 = vmatpush1.msra.mxu0 0.0
    %234 = vmatprep.subr.mxu0 0.0
    %235 = vmatpush1.msra.mxu0 0.0
    %236 = vmatprep.subr.mxu0 0.0
    %237 = vmatpush1.msra.mxu0 0.0
    %238 = vmatprep.subr.mxu0 0.0
    %239 = vmatpush1.msra.mxu0 0.0
    %240 = vmatprep.subr.mxu0 0.0
    %241 = vmatpush1.msra.mxu0 0.0
    %242 = vmatprep.subr.mxu0 0.0
    %243 = vmatpush1.msra.mxu0 0.0
    %244 = vmatprep.subr.mxu0 0.0
    %245 = vmatpush1.msra.mxu0 0.0
    %246 = vmatprep.subr.mxu0 0.0
    %247 = vmatpush1.msra.mxu0 0.0
    %248 = vmatprep.subr.mxu0 0.0
    %249 = vmatpush1.msra.mxu0 0.0
    %250 = vmatprep.subr.mxu0 0.0
    %251 = vmatpush1.msra.mxu0 0.0
    %252 = vmatprep.mubr.f32.mxu0 0.0
    %253 = vmatmul.mubr.f32.gmra.mrb[0].mxu0 %v186
    %v254 = vpop.f32.mrb[0].mxu0
    %v255 = vadd.f32 %v184, %v254
    %v256 = vpop.f32.mrb[0].mxu0
    %257 = vdwg.mxu0
    %vm258 = vcmask 122880
    %v259 = vsel %vm258, %v255, 0.0
    %260 = vadd.xlane.f32.xlu0 %v259
    %v261 = vpop.xlane.xlu0 %260
    %vm262 = vcmask 0
    %263 = vst.msk [vmem:[#allocation2] sm:$0x1] %vm262, %v261
    // Predicated region
    $region10: #{model_container_forward.1} parent=1 // pred_check
      _
    $region11: #{model_container_forward.1} parent=1 // pred_check_branch
      %265 = sbr.rel (0) target = $region13
    $region12: #{model_container_forward.1} parent=1 // pred_region
      %s267 = ssub.s32 16, 16
      %268 = vsyncadd [#allocation3], %s267
      %s270 = sshll.u32 [#allocation2], 4
      %s271 = int_to_ptr.vmem [resolvable:$true] %s270
      %273 = dma.vmem_to_hbm [thread:$0]  %s271, 16, %s2, [#allocation3]
    $region13: #{model_container_forward.1} parent=1 // pred_fallthru
      _
    // Predicated region
    $region14: #{model_container_forward.1} parent=1 // pred_check
      _
    $region15: #{model_container_forward.1} parent=1 // pred_check_branch
      %275 = sbr.rel (0) target = $region17
    $region16: #{model_container_forward.1} parent=1 // pred_region
      %276 = dma.done [#allocation3], 16
    $region17: #{model_container_forward.1} parent=1 // pred_fallthru
      _
    %277 = vsyncpa [#allocation3], 1

</llo_original>
